<compile_context>
chip_gen: v5e
topology: v5e:2x2
jax: 0.10.0
libtpu: 0.0.40
codegen_flags: <defaults>
</compile_context>

<pallas_src>
import functools

import jax
import jax.numpy as jnp
from jax import lax
from jax.experimental import pallas as pl
from jax.experimental.pallas import tpu as pltpu

_LANES = 128
_TARGET_BLOCK_ROWS = 8192                 # (8192,128) f32 block = 4 MiB
_DEFAULT_VMEM_BYTES = 64 * 1024 * 1024    # conservative (v7x per-TC) fallback


def _round_up(a, b):
    return -(-a // b) * b


def _sublane_multiple(dtype):
    itemsize = jnp.dtype(dtype).itemsize
    return 8 * max(1, 4 // max(1, itemsize))   # f32:8, bf16:16, int8/fp8:32


def _vmem_capacity_bytes():
    try:
        cap = int(pltpu.get_tpu_info().vmem_capacity_bytes)
    except Exception:
        cap = _DEFAULT_VMEM_BYTES
    # Clamp to sane bounds in case the query is unavailable / surprising.
    return max(32 * 1024 * 1024, min(cap, 128 * 1024 * 1024))


# ---------------------------------------------------------------------------
# Fast path: whole slab resident in VMEM, fused mean + subtract (2n HBM bytes).
# ---------------------------------------------------------------------------
def _centered_fused_kernel(x_ref, o_ref, *, inv_n):
    xf = x_ref[...].astype(jnp.float32)
    mean = jnp.sum(xf) * inv_n            # inv_n folded at trace time
    o_ref[...] = (xf - mean).astype(o_ref.dtype)


# ---------------------------------------------------------------------------
# Tiled path, pass 1: per-block (8,128) partial sums.  Grid axis is fully
# parallel (each block owns its output slot) so both v7x TCs can stream it.
# ---------------------------------------------------------------------------
def _partial_sum_kernel(x_ref, part_ref, *, block_rows, valid_rows, need_mask):
    xf = x_ref[...].astype(jnp.float32)                     # (block_rows, 128)
    if need_mask:                                           # static Python bool
        i = pl.program_id(0)
        row = lax.broadcasted_iota(jnp.int32, xf.shape, 0)
        xf = jnp.where(row < (valid_rows - i * block_rows), xf, 0.0)
    # (block_rows,128)->(block_rows//8,8,128): leading-axis sum is pure VPU
    # vreg adds; no per-step cross-sublane/lane XLU reduce on the hot path.
    part_ref[0] = jnp.sum(xf.reshape(-1, 8, _LANES), axis=0)  # (8, 128)


# ---------------------------------------------------------------------------
# Tiled path, pass 2: x - mean over row blocks (mean scalar lives in SMEM).
# ---------------------------------------------------------------------------
def _subtract_kernel(mean_ref, x_ref, o_ref):
    mean = mean_ref[0, 0]                                   # scalar SMEM read
    o_ref[...] = (x_ref[...].astype(jnp.float32) - mean).astype(o_ref.dtype)


def centered_layer(x, *, force_tiled=False):
    """X - X.mean() over all elements (matches torch CenteredLayer.forward)."""
    orig_shape = x.shape
    orig_dtype = x.dtype
    n = int(x.size)
    if n == 0:
        return x
    inv_n = 1.0 / float(n)                    # static trace-time constant
    itemsize = jnp.dtype(orig_dtype).itemsize
    sub = _sublane_multiple(orig_dtype)

    vmem_cap = _vmem_capacity_bytes()
    fast_cap = int(0.70 * vmem_cap)           # in+out(+temp) budget for fused path
    fast_vmem_limit = int(0.85 * vmem_cap)
    tiled_vmem_limit = min(int(0.50 * vmem_cap), 40 * 1024 * 1024)

    aligned = (n % _LANES) == 0
    rows = n // _LANES if aligned else _round_up(n, _LANES) // _LANES

    # Operand view for the fused path: free (bitcast) reshape, no data copy.
    if aligned:
        x_fast = x.reshape(rows, _LANES)                    # lane-dense slab
    else:
        last = orig_shape[-1] if x.ndim >= 1 else 1
        x_fast = x.reshape(n // last, last)                 # collapse leading dims

    # Padded-tile VMEM footprint estimate: in + out (+ one f32 temp for <32-bit).
    fr, fc = x_fast.shape
    padded_elems = _round_up(fr, sub) * _round_up(fc, _LANES)
    per_elem = 2 * itemsize + (0 if itemsize >= 4 else 4)
    est_fast = padded_elems * per_elem

    tiny = rows <= max(2 * sub, 16)
    use_fast = tiny or (est_fast <= fast_cap and not force_tiled)

    if use_fast:
        out = pl.pallas_call(
            functools.partial(_centered_fused_kernel, inv_n=inv_n),
            out_shape=jax.ShapeDtypeStruct(x_fast.shape, orig_dtype),
            in_specs=[pl.BlockSpec(x_fast.shape, lambda *_: (0, 0))],
            out_specs=pl.BlockSpec(x_fast.shape, lambda *_: (0, 0)),
            compiler_params=pltpu.CompilerParams(
                vmem_limit_bytes=fast_vmem_limit),
            cost_estimate=pl.CostEstimate(
                flops=2 * n, transcendentals=0,
                bytes_accessed=2 * n * itemsize),
        )(x_fast)
        return out.reshape(orig_shape)

    # -------------------------- tiled two-pass path --------------------------
    if aligned:
        x2d = x.reshape(rows, _LANES)                       # free reshape
        pad_tail = False
    else:
        # Rare case: large AND ragged.  Falls back to a padded copy (zeros do
        # not perturb the sum; inv_n uses the true n) plus a final [:n] slice.
        padded_n = rows * _LANES
        flat = jnp.pad(x.reshape(-1), (0, padded_n - n))
        x2d = flat.reshape(rows, _LANES)
        pad_tail = True

    if rows >= _TARGET_BLOCK_ROWS:
        block_rows = _TARGET_BLOCK_ROWS                     # 4 MiB f32 block
    else:
        block_rows = max(sub, (rows // sub) * sub)          # <= rows, mult of sub
    num_blocks = pl.cdiv(rows, block_rows)
    need_mask = (rows % block_rows) != 0                    # partial last block

    # Pass 1: per-block partial sums (parallel grid; no carried accumulator).
    partials = pl.pallas_call(
        functools.partial(_partial_sum_kernel, block_rows=block_rows,
                          valid_rows=rows, need_mask=need_mask),
        out_shape=jax.ShapeDtypeStruct((num_blocks, 8, _LANES), jnp.float32),
        grid=(num_blocks,),
        in_specs=[pl.BlockSpec((block_rows, _LANES), lambda i: (i, 0))],
        out_specs=pl.BlockSpec((1, 8, _LANES), lambda i: (i, 0, 0)),
        compiler_params=pltpu.CompilerParams(
            dimension_semantics=("parallel",),
            vmem_limit_bytes=tiled_vmem_limit),
        cost_estimate=pl.CostEstimate(
            flops=n, transcendentals=0,
            bytes_accessed=n * itemsize + num_blocks * 8 * _LANES * 4),
    )(x2d)

    # Tiny XLA reduction of the partials -> scalar mean (passed via SMEM).
    mean_arr = (jnp.sum(partials) * inv_n).reshape(1, 1).astype(jnp.float32)

    # Pass 2: elementwise subtract over independent row blocks.
    out2d = pl.pallas_call(
        _subtract_kernel,
        out_shape=jax.ShapeDtypeStruct(x2d.shape, orig_dtype),
        grid=(num_blocks,),
        in_specs=[
            pl.BlockSpec(memory_space=pltpu.MemorySpace.SMEM),   # mean (1,1)
            pl.BlockSpec((block_rows, _LANES), lambda i: (i, 0)),
        ],
        out_specs=pl.BlockSpec((block_rows, _LANES), lambda i: (i, 0)),
        compiler_params=pltpu.CompilerParams(
            dimension_semantics=("parallel",),
            vmem_limit_bytes=tiled_vmem_limit),
        cost_estimate=pl.CostEstimate(
            flops=n, transcendentals=0,
            bytes_accessed=2 * n * itemsize),
    )(mean_arr, x2d)

    if pad_tail:
        return out2d.reshape(-1)[:n].reshape(orig_shape)
    return out2d.reshape(orig_shape)


if __name__ == "__main__":
    key = jax.random.PRNGKey(0)
    k1, k2, k3, k4, k5 = jax.random.split(key, 5)

    # 1) NCHW demo shape (n multiple of 128): fused whole-resident fast path.
    x = jax.random.normal(k1, (2, 4, 16, 16), dtype=jnp.float32)
    y = jax.block_until_ready(centered_layer(x))
    assert jnp.allclose(y, x - jnp.mean(x), atol=1e-5, rtol=1e-5), "fast path mismatch"
    assert abs(float(jnp.mean(y))) < 1e-4, "fast path output mean not ~0"

    # 2) Ragged element count (105, not a multiple of 128): pad-free fast path.
    xr = jax.random.normal(k2, (3, 5, 7), dtype=jnp.float32)
    yr = jax.block_until_ready(centered_layer(xr))
    assert jnp.allclose(yr, xr - jnp.mean(xr), atol=1e-5, rtol=1e-5), "ragged path mismatch"

    # 3) Tiled two-pass path: 2 blocks, partial (masked) last block.
    xt = jax.random.normal(k3, (8200, 128), dtype=jnp.float32)
    yt = jax.block_until_ready(centered_layer(xt, force_tiled=True))
    assert jnp.allclose(yt, xt - jnp.mean(xt), atol=1e-5, rtol=1e-5), "tiled path mismatch"
    assert abs(float(jnp.mean(yt))) < 1e-4, "tiled output mean not ~0"

    # 4) Large-ish ragged input forced onto the padded tiled fallback.
    xp = jax.random.normal(k4, (1025, 1001), dtype=jnp.float32)
    yp = jax.block_until_ready(centered_layer(xp, force_tiled=True))
    assert jnp.allclose(yp, xp - jnp.mean(xp), atol=1e-5, rtol=1e-5), "padded tiled mismatch"

    # 5) bf16 input: mean/subtract in f32, single cast back.
    xb = jax.random.normal(k5, (2, 4, 16, 16), dtype=jnp.bfloat16)
    yb = jax.block_until_ready(centered_layer(xb))
    xb32 = xb.astype(jnp.float32)
    refb = (xb32 - jnp.mean(xb32)).astype(jnp.bfloat16)
    assert jnp.allclose(yb.astype(jnp.float32), refb.astype(jnp.float32),
                        atol=5e-2, rtol=5e-2), "bf16 path mismatch"

    print("KERNEL_OK")
</pallas_src>

<mosaic_0001>
module attributes {stable_mosaic.version = 11 : i64} {
  func.func @_centered_fused_kernel(%arg0: memref<16x128xf32, #tpu.memory_space<vmem>>, %arg1: memref<16x128xf32, #tpu.memory_space<vmem>>) attributes {dimension_semantics = [], scalar_prefetch = 0 : i64, scratch_operands = 0 : i64, tpu.core_type = #tpu.core_type<tc>} {
    %c0 = arith.constant 0 : index
    %c0_0 = arith.constant 0 : index
    %0 = vector.load %arg0[%c0, %c0_0] : memref<16x128xf32, #tpu.memory_space<vmem>>, vector<16x128xf32>
    %1 = vector.shape_cast %0 : vector<16x128xf32> to vector<1x16x128xf32>
    %cst = arith.constant dense<0.000000e+00> : vector<1xf32>
    %2 = vector.multi_reduction <add>, %1, %cst [1, 2] : vector<1x16x128xf32> to vector<1xf32>
    %3 = vector.shape_cast %2 : vector<1xf32> to vector<1x1x1xf32>
    %4 = vector.extract %3[0, 0, 0] : f32 from vector<1x1x1xf32>
    %cst_1 = arith.constant 4.8828125E-4 : f32
    %5 = arith.mulf %4, %cst_1 : f32
    %6 = vector.broadcast %5 : f32 to vector<16x128xf32>
    %7 = arith.subf %0, %6 : vector<16x128xf32>
    %c0_2 = arith.constant 0 : index
    %c0_3 = arith.constant 0 : index
    %8 = vector.load %arg1[%c0_2, %c0_3] : memref<16x128xf32, #tpu.memory_space<vmem>>, vector<16x128xf32>
    tpu.vector_store %arg1[%c0_2, %c0_3], %7 {strides = array<i32>} : memref<16x128xf32, #tpu.memory_space<vmem>>, vector<16x128xf32>,
    return
  }
}

</mosaic_0001>

<llo_original>
// kernel: tpu_custom_call.1
$region0: #{tpu_custom_call.1}
  #allocation0 [shape = 'u32[]', space=smem, size = 0x4, offset = 0x4, fixed_abs, tag = 'smem constant byte address 0x4 - core index']
  #allocation1 [shape = 'u32[72,128]{1,0:T(1,128)}', space=vmem, size = 0x9000, scoped, tag = 'internal scratch']
  %s0 = inlined_call_operand.hbm [shape: f32[16,128], index: 0, kind: input, shape index: {}]
  %s1 = inlined_call_operand.hbm [shape: f32[16,128], index: 1, kind: output, shape index: {}]
  %s2 = sld [smem:[#allocation0]]
  $region18: #{tpu_custom_call.1} parent=0
    _
  %s4 = ssub.s32 1, %s2
  %s5 = scalar_select 0, %s4, %s2
  $region1: #{tpu_custom_call.1} parent=0
    #allocation2 [shape = 'u8[8192]{0}', space=vmem, size = 0x2000, scoped, tag = 'input window, operand 0, single buffered']
    #allocation3 [shape = 's32[1]{0}', space=sflag, size = 0x4, scoped, tag = 'scoped memory for tpu_custom_call.1']
    #allocation4 [shape = 's32[1]{0}', space=sflag, size = 0x4, scoped, tag = 'scoped memory for tpu_custom_call.1']
    #allocation5 [shape = 'u8[8192]{0}', space=vmem, size = 0x2000, scoped, tag = 'output window, operand 0, single buffered']
    %6 = vsyncpa [#allocation3], 0
    %7 = vsyncpa [#allocation4], 0
    // Predicated region
    $region2: #{tpu_custom_call.1} parent=1 // pred_check
      _
    $region3: #{tpu_custom_call.1} parent=1 // pred_check_branch
      %9 = sbr.rel (0) target = $region5
    $region4: #{tpu_custom_call.1} parent=1 // pred_region
      %11 = vsyncadd [#allocation3], 0
      %s12 = sshll.u32 %s0, 4
      %s13 = int_to_ptr.hbm [resolvable:$true] %s12
      %s14 = sshll.u32 [#allocation2], 4
      %s15 = int_to_ptr.vmem [resolvable:$true] %s14
      %20 = dma.hbm_to_vmem [thread:$0]  %s13, 256, %s15, [#allocation3], 128, 128, 8
    $region5: #{tpu_custom_call.1} parent=1 // pred_fallthru
      _
    // Predicated region
    $region6: #{tpu_custom_call.1} parent=1 // pred_check
      _
    $region7: #{tpu_custom_call.1} parent=1 // pred_check_branch
      %22 = sbr.rel (0) target = $region9
    $region8: #{tpu_custom_call.1} parent=1 // pred_region
      %24 = dma.done [#allocation3], 256
    $region9: #{tpu_custom_call.1} parent=1 // pred_fallthru
      _
    %v25 = vld [vmem:[#allocation2] sm:$0xff]
    %v26 = vld [vmem:[#allocation2 + $0x8] sm:$0xff]
    %v27 = vadd.f32 %v25, %v26
    %28 = vadd.xlane.f32.xlu0 %v27
    %v29 = vpop.xlane.xlu0 %28
    %v30 = vrot.slane %v29, 4
    %v31 = vadd.f32 %v29, %v30
    %v32 = vrot.slane %v31, 2
    %v33 = vadd.f32 %v31, %v32
    %v34 = vrot.slane %v33, 1
    %v35 = vadd.f32 %v33, %v34
    %s36 = vtos %v35
    %s37 = smul.f32 %s36, 0.00048828125
    %v38 = vstv %s37
    %v39 = vsub.f32 %v25, %v38
    %v40 = vsub.f32 %v26, %v38
    %41 = vst [vmem:[#allocation5] sm:$0xff] %v39
    %42 = vst [vmem:[#allocation5 + $0x8] sm:$0xff] %v40
    // Predicated region
    $region10: #{tpu_custom_call.1} parent=1 // pred_check
      _
    $region11: #{tpu_custom_call.1} parent=1 // pred_check_branch
      %44 = sbr.rel (0) target = $region13
    $region12: #{tpu_custom_call.1} parent=1 // pred_region
      %46 = vsyncadd [#allocation4], 0
      %s47 = sshll.u32 [#allocation5], 4
      %s48 = int_to_ptr.vmem [resolvable:$true] %s47
      %s49 = sshll.u32 %s1, 4
      %s50 = int_to_ptr.hbm [resolvable:$true] %s49
      %55 = dma.vmem_to_hbm [thread:$0]  %s48, 256, %s50, [#allocation4], 128, 128, 8
    $region13: #{tpu_custom_call.1} parent=1 // pred_fallthru
      _
    // Predicated region
    $region14: #{tpu_custom_call.1} parent=1 // pred_check
      _
    $region15: #{tpu_custom_call.1} parent=1 // pred_check_branch
      %57 = sbr.rel (0) target = $region17
    $region16: #{tpu_custom_call.1} parent=1 // pred_region
      %59 = dma.done [#allocation4], 256
    $region17: #{tpu_custom_call.1} parent=1 // pred_fallthru
      _
    %60 = vsyncpa [#allocation3], 1
    %61 = vsyncpa [#allocation4], 1

</llo_original>
